<compile_context>
chip_gen: v7x
topology: tpu7x:2x2x1
jax: 0.10.0
libtpu: 0.0.40
codegen_flags: <defaults>
</compile_context>

<pallas_src>
import functools

import jax
import jax.numpy as jnp
from jax.experimental import pallas as pl
from jax.experimental.pallas import tpu as pltpu


def _dense_conv_kernel(xp_ref, w_ref, b_ref, o_ref, buf, sem, *,
                       d_tile, width, cin, p2pad, n_d_tiles):
    """One (batch, D-tile) grid step.

    xp_ref : (N, Cin, (D+2)*P2pad)  zero-padded input, HBM (pl.ANY), depth and
                                    the padded plane flattened on the lane axis.
    w_ref  : (Cout, 27*Cin)         col = ((kd*3 + kh)*3 + kw)*Cin + c
    b_ref  : (Cout, 1)
    o_ref  : (1, Cout, tD*P2pad)    conv output tile (junk border lanes are
                                    sliced off in the wrapper).
    buf    : (2, Cin, (tD+2)*P2pad) double-buffered halo slab (VMEM scratch).
    sem    : (2,) DMA semaphores.
    """
    td = d_tile
    l_in = (td + 2) * p2pad
    l_out = td * p2pad
    b = pl.program_id(0)
    i = pl.program_id(1)
    slot = i % 2

    def start_fetch(batch_idx, tile_idx, s):
        pltpu.make_async_copy(
            xp_ref.at[batch_idx, :, pl.ds(tile_idx * l_out, l_in)],
            buf.at[s],
            sem.at[s],
        ).start()

    # First D-tile of each batch item fetches its own slab (not overlapped).
    @pl.when(i == 0)
    def _():
        start_fetch(b, 0, 0)

    # Prefetch the next D-tile of the SAME batch item into the other slot so the
    # DMA overlaps this step's compute.  Never crosses a batch boundary, so every
    # started DMA has exactly one matching wait (no dangling transfers).
    @pl.when(i + 1 < n_d_tiles)
    def _():
        start_fetch(b, i + 1, 1 - slot)

    # Wait for the current step's slab.
    pltpu.make_async_copy(
        xp_ref.at[b, :, pl.ds(i * l_out, l_in)],
        buf.at[slot],
        sem.at[slot],
    ).wait()

    xps = buf[slot]                                      # (Cin, (tD+2)*P2pad)

    # 9 in-plane taps = static lane shifts of the flattened (H+2)x(W+2) planes.
    # Wrap-around / cross-plane bleed only pollutes padded-border output lanes,
    # which the wrapper slices off.
    shifted = []
    for kh in range(3):
        for kw in range(3):
            s = (kh - 1) * (width + 2) + (kw - 1)
            shifted.append(xps if s == 0 else jnp.roll(xps, -s, axis=-1))

    # K-fused im2col: row order (kd, kh, kw, c) matches w_ref's column order.
    # The 3 depth taps are 128-aligned lane slices of the shifted slabs, so no
    # reshapes or relayouts are needed to merge (tD, P2pad) onto the lane axis.
    rows = []
    for kd in range(3):
        for t in range(9):
            rows.append(shifted[t][:, kd * p2pad: kd * p2pad + l_out])
    patches = jnp.concatenate(rows, axis=0)              # (27*Cin, tD*P2pad)

    # One MXU matmul per grid step; bias + ReLU in f32; single cast at the store.
    # TODO(synk): if profiling shows this MXU-bound with f32 inputs on v6e/v7x,
    # cast w_ref[...] / patches to bf16 here (keep preferred_element_type=f32).
    acc = jnp.dot(w_ref[...], patches, preferred_element_type=jnp.float32)
    y = jnp.maximum(acc + b_ref[...].astype(jnp.float32), 0.0)
    o_ref[0] = y.astype(o_ref.dtype)                     # one lane-dense store


def _vmem_limit_bytes():
    """Per-generation VMEM budget (v5e/v6e: 128 MiB physical, v7x: 64 MiB)."""
    cap = 64 * 1024 * 1024                               # safe fallback
    try:
        cap = int(pltpu.get_tpu_info().vmem_capacity_bytes)
    except Exception:
        pass
    return max(16 * 1024 * 1024, min(int(cap * 0.85), 96 * 1024 * 1024))


def _working_set_bytes(td, cin, cout, p2pad, in_item, out_item):
    """Per-grid-step VMEM working set for a given D-tile."""
    l_in = (td + 2) * p2pad
    l_out = td * p2pad
    byt = 2 * cin * l_in * in_item            # double-buffered halo slab scratch
    byt += 10 * cin * l_in * in_item          # xps + 9 shifted copies
    byt += 27 * cin * l_out * in_item         # im2col patch matrix
    byt += 2 * cout * l_out * 4               # f32 matmul acc + relu result
    byt += 2 * cout * l_out * out_item        # double-buffered output block
    byt += cout * 27 * cin * in_item + cout * 4
    return byt


def _pick_d_tile(d, cin, cout, p2pad, in_item, out_item, budget_bytes):
    """Largest divisor of D whose working set fits the budget.  With the fully
    lane-flattened layout tD only scales lane dims (always multiples of 128),
    so there is no sublane-tiling constraint on tD for any dtype."""
    fits = [td for td in range(1, d + 1)
            if d % td == 0 and
            _working_set_bytes(td, cin, cout, p2pad, in_item, out_item)
            <= budget_bytes]
    if not fits:
        return 1
    # Prefer >= 2 D-tiles per batch item so the halo-slab DMA of tile i+1
    # overlaps the compute of tile i (the first tile is never overlapped).
    multi = [td for td in fits if d // td >= 2]
    return max(multi) if multi else max(fits)


def dense_layer(x, weight, bias, *, d_tile=None):
    """x: (N, Cin, D, H, W); weight: (Cout, Cin, 3, 3, 3); bias: (Cout,).
    Returns (N, Cin+Cout, D, H, W) == torch.cat([x, relu(conv3d(x))], dim=1)."""
    n, cin, d, h, w = x.shape
    cout = weight.shape[0]
    p2 = (h + 2) * (w + 2)
    p2pad = ((p2 + 127) // 128) * 128         # lane-dense plane (multiple of 128)

    in_item = jnp.dtype(x.dtype).itemsize
    vmem_limit = _vmem_limit_bytes()
    if d_tile is None:
        d_tile = _pick_d_tile(d, cin, cout, p2pad, in_item, in_item,
                              int(0.75 * vmem_limit))
    if d % d_tile != 0:
        raise ValueError(f"d_tile={d_tile} must divide D={d}")
    n_d_tiles = d // d_tile

    # Glue (one fused XLA pass): zero-pad D/H/W by 1, flatten (H+2, W+2) onto the
    # lane axis, pad the plane to a multiple of 128 lanes, flatten depth too.
    # TODO(synk): fold this padding pass into the kernel (DMA unpadded rows into
    # a zeroed VMEM slab) to drop one full HBM read+write pass over x.
    xp = jnp.pad(x, ((0, 0), (0, 0), (1, 1), (1, 1), (1, 1)))
    xp = xp.reshape(n, cin, d + 2, p2)
    xp = jnp.pad(xp, ((0, 0), (0, 0), (0, 0), (0, p2pad - p2)))
    xp = xp.reshape(n, cin, (d + 2) * p2pad)

    # Weight taps flattened so column = ((kd*3 + kh)*3 + kw)*Cin + c.
    w_flat = jnp.transpose(weight, (0, 2, 3, 4, 1)).reshape(cout, 27 * cin)
    b2 = bias.reshape(cout, 1)

    kernel = functools.partial(
        _dense_conv_kernel, d_tile=d_tile, width=w, cin=cin, p2pad=p2pad,
        n_d_tiles=n_d_tiles)

    conv_flat = pl.pallas_call(
        kernel,
        out_shape=jax.ShapeDtypeStruct((n, cout, d * p2pad), x.dtype),
        grid=(n, n_d_tiles),
        in_specs=[
            # Input stays in HBM; the kernel DMAs only the (Cin, (tD+2)*P2pad)
            # halo slab it needs per grid step (double-buffered).
            pl.BlockSpec(memory_space=pl.ANY),
            pl.BlockSpec((cout, 27 * cin), lambda bb, ii: (0, 0)),
            pl.BlockSpec((cout, 1), lambda bb, ii: (0, 0)),
        ],
        out_specs=pl.BlockSpec((1, cout, d_tile * p2pad),
                               lambda bb, ii: (bb, 0, ii)),
        scratch_shapes=[
            pltpu.VMEM((2, cin, (d_tile + 2) * p2pad), x.dtype),
            pltpu.SemaphoreType.DMA((2,)),
        ],
        compiler_params=pltpu.CompilerParams(
            # Batch axis may be megacore-split; the D-tile axis must stay
            # sequential (the manual double-buffering walks it in order).
            dimension_semantics=("parallel", "arbitrary"),
            vmem_limit_bytes=vmem_limit),
    )(xp, w_flat, b2)

    # Un-pad the conv result (drop junk lanes + spatial border) and concatenate
    # the passthrough channels straight from x, so passthrough data never
    # round-trips through the padded lane layout.
    conv = conv_flat.reshape(n, cout, d, p2pad)[:, :, :, :p2]
    conv = conv.reshape(n, cout, d, h + 2, w + 2)[:, :, :, 1:1 + h, 1:1 + w]
    return jnp.concatenate([x, conv], axis=1)


if __name__ == "__main__":
    # Small shapes consistent with the module: batch=2, Cin=4, Cout=8, D=16, H=W=8.
    N, CIN, COUT, D, H, W = 2, 4, 8, 16, 8, 8

    key = jax.random.PRNGKey(0)
    kx, kwt, kb = jax.random.split(key, 3)

    # Deterministic parameter init mirroring nn.Conv3d defaults
    # (kaiming-uniform-style bound = 1/sqrt(fan_in), fan_in = Cin*3*3*3).
    fan_in = CIN * 27
    bound = 1.0 / (fan_in ** 0.5)
    weight = jax.random.uniform(kwt, (COUT, CIN, 3, 3, 3), jnp.float32, -bound, bound)
    bias = jax.random.uniform(kb, (COUT,), jnp.float32, -bound, bound)
    x = jax.random.normal(kx, (N, CIN, D, H, W), jnp.float32)

    # Pure-JAX reference.
    ref_conv = jax.lax.conv_general_dilated(
        x, weight, window_strides=(1, 1, 1), padding="SAME",
        dimension_numbers=("NCDHW", "OIDHW", "NCDHW"))
    ref = jnp.concatenate(
        [x, jnp.maximum(ref_conv + bias.reshape(1, -1, 1, 1, 1), 0.0)], axis=1)

    # 1) Auto-picked D-tile (prefers >=2 tiles -> exercises prefetch overlap).
    out = jax.block_until_ready(dense_layer(x, weight, bias))
    assert out.shape == (N, CIN + COUT, D, H, W)
    assert jnp.allclose(out, ref, atol=1e-4, rtol=1e-4), \
        float(jnp.max(jnp.abs(out - ref)))

    # 2) Explicit smaller D-tile (4 tiles/item -> deeper double-buffered DMA walk).
    out_t = jax.block_until_ready(dense_layer(x, weight, bias, d_tile=4))
    assert jnp.allclose(out_t, ref, atol=1e-4, rtol=1e-4), \
        float(jnp.max(jnp.abs(out_t - ref)))

    print("KERNEL_OK")
</pallas_src>

<mosaic_0001>
module attributes {stable_mosaic.version = 11 : i64} {
  func.func @_dense_conv_kernel(%arg0: i32, %arg1: i32, %arg2: memref<2x4x2304xf32, #tpu.memory_space<any>>, %arg3: memref<8x108xf32, #tpu.memory_space<vmem>>, %arg4: memref<8x1xf32, #tpu.memory_space<vmem>>, %arg5: memref<1x8x1024xf32, #tpu.memory_space<vmem>>, %arg6: memref<2x4x1280xf32, #tpu.memory_space<vmem>>, %arg7: memref<2x!tpu.dma_semaphore, #tpu.memory_space<semaphore_mem>>) attributes {dimension_semantics = [#tpu.dimension_semantics<parallel>, #tpu.dimension_semantics<arbitrary>], iteration_bounds = array<i64: 2, 2>, scalar_prefetch = 0 : i64, scratch_operands = 2 : i64, tpu.core_type = #tpu.core_type<tc>, window_params = [{}, {pipeline_mode = #tpu.pipeline_mode<synchronous>, transform_indices = @transform_1, window_bounds = array<i64: 8, 108>}, {pipeline_mode = #tpu.pipeline_mode<synchronous>, transform_indices = @transform_2, window_bounds = array<i64: 8, 1>}, {transform_indices = @transform_3, window_bounds = array<i64: 1, 8, 1024>}]} {
    %c2_i32 = arith.constant 2 : i32
    %c0_i32 = arith.constant 0 : i32
    %0 = arith.cmpi eq, %c2_i32, %c0_i32 : i32
    %c1_i32 = arith.constant 1 : i32
    %1 = arith.select %0, %c1_i32, %c2_i32 : i32
    %2 = arith.remsi %arg1, %1 : i32
    %c0_i32_0 = arith.constant 0 : i32
    %3 = arith.cmpi ne, %2, %c0_i32_0 : i32
    %c0_i32_1 = arith.constant 0 : i32
    %4 = arith.cmpi slt, %2, %c0_i32_1 : i32
    %c0_i32_2 = arith.constant 0 : i32
    %5 = arith.cmpi slt, %1, %c0_i32_2 : i32
    %6 = arith.xori %4, %5 : i1
    %7 = arith.andi %6, %3 : i1
    %8 = arith.addi %2, %1 : i32
    %9 = arith.select %7, %8, %2 : i32
    %c0_i32_3 = arith.constant 0 : i32
    %10 = arith.cmpi eq, %arg1, %c0_i32_3 : i32
    %11 = arith.extui %10 : i1 to i32
    %c0_i32_4 = arith.constant 0 : i32
    %12 = arith.cmpi ne, %11, %c0_i32_4 : i32
    scf.if %12 {
      %c0_i32_20 = arith.constant 0 : i32
      %c0_i32_21 = arith.constant 0 : i32
      %c0_i32_22 = arith.constant 0 : i32
      %c0_i32_23 = arith.constant 0 : i32
      %91 = tpu.memref_slice %arg2[%arg0, %c0_i32_22, %c0_i32_23] : memref<2x4x2304xf32, #tpu.memory_space<any>> -> memref<1x4x1280xf32, #tpu.memory_space<any>>
      %92 = tpu.memref_squeeze %91 : memref<1x4x1280xf32, #tpu.memory_space<any>> -> memref<4x1280xf32, #tpu.memory_space<any>>
      %c0_i32_24 = arith.constant 0 : i32
      %c0_i32_25 = arith.constant 0 : i32
      %93 = tpu.memref_slice %arg6[%c0_i32_20, %c0_i32_24, %c0_i32_25] : memref<2x4x1280xf32, #tpu.memory_space<vmem>> -> memref<1x4x1280xf32, #tpu.memory_space<vmem>>
      %94 = tpu.memref_squeeze %93 : memref<1x4x1280xf32, #tpu.memory_space<vmem>> -> memref<4x1280xf32, #tpu.memory_space<vmem>>
      %95 = tpu.memref_slice %arg7[%c0_i32_21] : memref<2x!tpu.dma_semaphore, #tpu.memory_space<semaphore_mem>> -> memref<1x!tpu.dma_semaphore, #tpu.memory_space<semaphore_mem>>
      %96 = tpu.memref_squeeze %95 : memref<1x!tpu.dma_semaphore, #tpu.memory_space<semaphore_mem>> -> memref<!tpu.dma_semaphore, #tpu.memory_space<semaphore_mem>>
      tpu.enqueue_dma source(%92 : memref<4x1280xf32, #tpu.memory_space<any>>) target(%94 : memref<4x1280xf32, #tpu.memory_space<vmem>>) target_semaphore(%96 : memref<!tpu.dma_semaphore, #tpu.memory_space<semaphore_mem>>)
    } else {
    }
    %c1_i32_5 = arith.constant 1 : i32
    %13 = arith.addi %arg1, %c1_i32_5 : i32
    %c2_i32_6 = arith.constant 2 : i32
    %14 = arith.cmpi slt, %13, %c2_i32_6 : i32
    %15 = arith.extui %14 : i1 to i32
    %c0_i32_7 = arith.constant 0 : i32
    %16 = arith.cmpi ne, %15, %c0_i32_7 : i32
    scf.if %16 {
      %c1_i32_20 = arith.constant 1 : i32
      %91 = arith.addi %arg1, %c1_i32_20 : i32
      %c1_i32_21 = arith.constant 1 : i32
      %92 = arith.subi %c1_i32_21, %9 : i32
      %c1024_i32_22 = arith.constant 1024 : i32
      %93 = arith.muli %91, %c1024_i32_22 : i32
      %c0_i32_23 = arith.constant 0 : i32
      %94 = tpu.memref_slice %arg2[%arg0, %c0_i32_23, %93] : memref<2x4x2304xf32, #tpu.memory_space<any>> -> memref<1x4x1280xf32, #tpu.memory_space<any>>
      %95 = tpu.memref_squeeze %94 : memref<1x4x1280xf32, #tpu.memory_space<any>> -> memref<4x1280xf32, #tpu.memory_space<any>>
      %c0_i32_24 = arith.constant 0 : i32
      %c0_i32_25 = arith.constant 0 : i32
      %96 = tpu.memref_slice %arg6[%92, %c0_i32_24, %c0_i32_25] : memref<2x4x1280xf32, #tpu.memory_space<vmem>> -> memref<1x4x1280xf32, #tpu.memory_space<vmem>>
      %97 = tpu.memref_squeeze %96 : memref<1x4x1280xf32, #tpu.memory_space<vmem>> -> memref<4x1280xf32, #tpu.memory_space<vmem>>
      %98 = tpu.memref_slice %arg7[%92] : memref<2x!tpu.dma_semaphore, #tpu.memory_space<semaphore_mem>> -> memref<1x!tpu.dma_semaphore, #tpu.memory_space<semaphore_mem>>
      %99 = tpu.memref_squeeze %98 : memref<1x!tpu.dma_semaphore, #tpu.memory_space<semaphore_mem>> -> memref<!tpu.dma_semaphore, #tpu.memory_space<semaphore_mem>>
      tpu.enqueue_dma source(%95 : memref<4x1280xf32, #tpu.memory_space<any>>) target(%97 : memref<4x1280xf32, #tpu.memory_space<vmem>>) target_semaphore(%99 : memref<!tpu.dma_semaphore, #tpu.memory_space<semaphore_mem>>)
    } else {
    }
    %c1024_i32 = arith.constant 1024 : i32
    %17 = arith.muli %arg1, %c1024_i32 : i32
    %c0_i32_8 = arith.constant 0 : i32
    %18 = tpu.memref_slice %arg2[%arg0, %c0_i32_8, %17] : memref<2x4x2304xf32, #tpu.memory_space<any>> -> memref<1x4x1280xf32, #tpu.memory_space<any>>
    %19 = tpu.memref_squeeze %18 : memref<1x4x1280xf32, #tpu.memory_space<any>> -> memref<4x1280xf32, #tpu.memory_space<any>>
    %c0_i32_9 = arith.constant 0 : i32
    %c0_i32_10 = arith.constant 0 : i32
    %20 = tpu.memref_slice %arg6[%9, %c0_i32_9, %c0_i32_10] : memref<2x4x1280xf32, #tpu.memory_space<vmem>> -> memref<1x4x1280xf32, #tpu.memory_space<vmem>>
    %21 = tpu.memref_squeeze %20 : memref<1x4x1280xf32, #tpu.memory_space<vmem>> -> memref<4x1280xf32, #tpu.memory_space<vmem>>
    %22 = tpu.memref_slice %arg7[%9] : memref<2x!tpu.dma_semaphore, #tpu.memory_space<semaphore_mem>> -> memref<1x!tpu.dma_semaphore, #tpu.memory_space<semaphore_mem>>
    %23 = tpu.memref_squeeze %22 : memref<1x!tpu.dma_semaphore, #tpu.memory_space<semaphore_mem>> -> memref<!tpu.dma_semaphore, #tpu.memory_space<semaphore_mem>>
    tpu.wait_dma2 semaphore(%23 : memref<!tpu.dma_semaphore, #tpu.memory_space<semaphore_mem>>) src(%19 : memref<4x1280xf32, #tpu.memory_space<any>>) dst(%21 : memref<4x1280xf32, #tpu.memory_space<vmem>>)
    %24 = arith.index_cast %9 : i32 to index
    %c0 = arith.constant 0 : index
    %c0_11 = arith.constant 0 : index
    %25 = vector.load %arg6[%24, %c0, %c0_11] : memref<2x4x1280xf32, #tpu.memory_space<vmem>>, vector<1x4x1280xf32>
    %26 = vector.shape_cast %25 : vector<1x4x1280xf32> to vector<4x1280xf32>
    %27 = vector.extract_strided_slice %26 {offsets = [0, 1269], sizes = [4, 11], strides = [1, 1]} : vector<4x1280xf32> to vector<4x11xf32>
    %28 = vector.extract_strided_slice %26 {offsets = [0, 0], sizes = [4, 1269], strides = [1, 1]} : vector<4x1280xf32> to vector<4x1269xf32>
    %29 = tpu.concatenate %27, %28 in 1 : vector<4x11xf32>, vector<4x1269xf32> -> vector<4x1280xf32>
    %30 = vector.extract_strided_slice %26 {offsets = [0, 1270], sizes = [4, 10], strides = [1, 1]} : vector<4x1280xf32> to vector<4x10xf32>
    %31 = vector.extract_strided_slice %26 {offsets = [0, 0], sizes = [4, 1270], strides = [1, 1]} : vector<4x1280xf32> to vector<4x1270xf32>
    %32 = tpu.concatenate %30, %31 in 1 : vector<4x10xf32>, vector<4x1270xf32> -> vector<4x1280xf32>
    %33 = vector.extract_strided_slice %26 {offsets = [0, 1271], sizes = [4, 9], strides = [1, 1]} : vector<4x1280xf32> to vector<4x9xf32>
    %34 = vector.extract_strided_slice %26 {offsets = [0, 0], sizes = [4, 1271], strides = [1, 1]} : vector<4x1280xf32> to vector<4x1271xf32>
    %35 = tpu.concatenate %33, %34 in 1 : vector<4x9xf32>, vector<4x1271xf32> -> vector<4x1280xf32>
    %36 = vector.extract_strided_slice %26 {offsets = [0, 1279], sizes = [4, 1], strides = [1, 1]} : vector<4x1280xf32> to vector<4x1xf32>
    %37 = vector.extract_strided_slice %26 {offsets = [0, 0], sizes = [4, 1279], strides = [1, 1]} : vector<4x1280xf32> to vector<4x1279xf32>
    %38 = tpu.concatenate %36, %37 in 1 : vector<4x1xf32>, vector<4x1279xf32> -> vector<4x1280xf32>
    %39 = vector.extract_strided_slice %26 {offsets = [0, 1], sizes = [4, 1279], strides = [1, 1]} : vector<4x1280xf32> to vector<4x1279xf32>
    %40 = vector.extract_strided_slice %26 {offsets = [0, 0], sizes = [4, 1], strides = [1, 1]} : vector<4x1280xf32> to vector<4x1xf32>
    %41 = tpu.concatenate %39, %40 in 1 : vector<4x1279xf32>, vector<4x1xf32> -> vector<4x1280xf32>
    %42 = vector.extract_strided_slice %26 {offsets = [0, 9], sizes = [4, 1271], strides = [1, 1]} : vector<4x1280xf32> to vector<4x1271xf32>
    %43 = vector.extract_strided_slice %26 {offsets = [0, 0], sizes = [4, 9], strides = [1, 1]} : vector<4x1280xf32> to vector<4x9xf32>
    %44 = tpu.concatenate %42, %43 in 1 : vector<4x1271xf32>, vector<4x9xf32> -> vector<4x1280xf32>
    %45 = vector.extract_strided_slice %26 {offsets = [0, 10], sizes = [4, 1270], strides = [1, 1]} : vector<4x1280xf32> to vector<4x1270xf32>
    %46 = vector.extract_strided_slice %26 {offsets = [0, 0], sizes = [4, 10], strides = [1, 1]} : vector<4x1280xf32> to vector<4x10xf32>
    %47 = tpu.concatenate %45, %46 in 1 : vector<4x1270xf32>, vector<4x10xf32> -> vector<4x1280xf32>
    %48 = vector.extract_strided_slice %26 {offsets = [0, 11], sizes = [4, 1269], strides = [1, 1]} : vector<4x1280xf32> to vector<4x1269xf32>
    %49 = vector.extract_strided_slice %26 {offsets = [0, 0], sizes = [4, 11], strides = [1, 1]} : vector<4x1280xf32> to vector<4x11xf32>
    %50 = tpu.concatenate %48, %49 in 1 : vector<4x1269xf32>, vector<4x11xf32> -> vector<4x1280xf32>
    %51 = vector.extract_strided_slice %29 {offsets = [0, 0], sizes = [4, 1024], strides = [1, 1]} : vector<4x1280xf32> to vector<4x1024xf32>
    %52 = vector.extract_strided_slice %32 {offsets = [0, 0], sizes = [4, 1024], strides = [1, 1]} : vector<4x1280xf32> to vector<4x1024xf32>
    %53 = vector.extract_strided_slice %35 {offsets = [0, 0], sizes = [4, 1024], strides = [1, 1]} : vector<4x1280xf32> to vector<4x1024xf32>
    %54 = vector.extract_strided_slice %38 {offsets = [0, 0], sizes = [4, 1024], strides = [1, 1]} : vector<4x1280xf32> to vector<4x1024xf32>
    %55 = vector.extract_strided_slice %26 {offsets = [0, 0], sizes = [4, 1024], strides = [1, 1]} : vector<4x1280xf32> to vector<4x1024xf32>
    %56 = vector.extract_strided_slice %41 {offsets = [0, 0], sizes = [4, 1024], strides = [1, 1]} : vector<4x1280xf32> to vector<4x1024xf32>
    %57 = vector.extract_strided_slice %44 {offsets = [0, 0], sizes = [4, 1024], strides = [1, 1]} : vector<4x1280xf32> to vector<4x1024xf32>
    %58 = vector.extract_strided_slice %47 {offsets = [0, 0], sizes = [4, 1024], strides = [1, 1]} : vector<4x1280xf32> to vector<4x1024xf32>
    %59 = vector.extract_strided_slice %50 {offsets = [0, 0], sizes = [4, 1024], strides = [1, 1]} : vector<4x1280xf32> to vector<4x1024xf32>
    %60 = vector.extract_strided_slice %29 {offsets = [0, 128], sizes = [4, 1024], strides = [1, 1]} : vector<4x1280xf32> to vector<4x1024xf32>
    %61 = vector.extract_strided_slice %32 {offsets = [0, 128], sizes = [4, 1024], strides = [1, 1]} : vector<4x1280xf32> to vector<4x1024xf32>
    %62 = vector.extract_strided_slice %35 {offsets = [0, 128], sizes = [4, 1024], strides = [1, 1]} : vector<4x1280xf32> to vector<4x1024xf32>
    %63 = vector.extract_strided_slice %38 {offsets = [0, 128], sizes = [4, 1024], strides = [1, 1]} : vector<4x1280xf32> to vector<4x1024xf32>
    %64 = vector.extract_strided_slice %26 {offsets = [0, 128], sizes = [4, 1024], strides = [1, 1]} : vector<4x1280xf32> to vector<4x1024xf32>
    %65 = vector.extract_strided_slice %41 {offsets = [0, 128], sizes = [4, 1024], strides = [1, 1]} : vector<4x1280xf32> to vector<4x1024xf32>
    %66 = vector.extract_strided_slice %44 {offsets = [0, 128], sizes = [4, 1024], strides = [1, 1]} : vector<4x1280xf32> to vector<4x1024xf32>
    %67 = vector.extract_strided_slice %47 {offsets = [0, 128], sizes = [4, 1024], strides = [1, 1]} : vector<4x1280xf32> to vector<4x1024xf32>
    %68 = vector.extract_strided_slice %50 {offsets = [0, 128], sizes = [4, 1024], strides = [1, 1]} : vector<4x1280xf32> to vector<4x1024xf32>
    %69 = vector.extract_strided_slice %29 {offsets = [0, 256], sizes = [4, 1024], strides = [1, 1]} : vector<4x1280xf32> to vector<4x1024xf32>
    %70 = vector.extract_strided_slice %32 {offsets = [0, 256], sizes = [4, 1024], strides = [1, 1]} : vector<4x1280xf32> to vector<4x1024xf32>
    %71 = vector.extract_strided_slice %35 {offsets = [0, 256], sizes = [4, 1024], strides = [1, 1]} : vector<4x1280xf32> to vector<4x1024xf32>
    %72 = vector.extract_strided_slice %38 {offsets = [0, 256], sizes = [4, 1024], strides = [1, 1]} : vector<4x1280xf32> to vector<4x1024xf32>
    %73 = vector.extract_strided_slice %26 {offsets = [0, 256], sizes = [4, 1024], strides = [1, 1]} : vector<4x1280xf32> to vector<4x1024xf32>
    %74 = vector.extract_strided_slice %41 {offsets = [0, 256], sizes = [4, 1024], strides = [1, 1]} : vector<4x1280xf32> to vector<4x1024xf32>
    %75 = vector.extract_strided_slice %44 {offsets = [0, 256], sizes = [4, 1024], strides = [1, 1]} : vector<4x1280xf32> to vector<4x1024xf32>
    %76 = vector.extract_strided_slice %47 {offsets = [0, 256], sizes = [4, 1024], strides = [1, 1]} : vector<4x1280xf32> to vector<4x1024xf32>
    %77 = vector.extract_strided_slice %50 {offsets = [0, 256], sizes = [4, 1024], strides = [1, 1]} : vector<4x1280xf32> to vector<4x1024xf32>
    %78 = tpu.concatenate %51, %52, %53, %54, %55, %56, %57, %58, %59, %60, %61, %62, %63, %64, %65, %66 in 0 : vector<4x1024xf32>, vector<4x1024xf32>, vector<4x1024xf32>, vector<4x1024xf32>, vector<4x1024xf32>, vector<4x1024xf32>, vector<4x1024xf32>, vector<4x1024xf32>, vector<4x1024xf32>, vector<4x1024xf32>, vector<4x1024xf32>, vector<4x1024xf32>, vector<4x1024xf32>, vector<4x1024xf32>, vector<4x1024xf32>, vector<4x1024xf32> -> vector<64x1024xf32>
    %79 = tpu.concatenate %67, %68, %69, %70, %71, %72, %73, %74, %75, %76, %77 in 0 : vector<4x1024xf32>, vector<4x1024xf32>, vector<4x1024xf32>, vector<4x1024xf32>, vector<4x1024xf32>, vector<4x1024xf32>, vector<4x1024xf32>, vector<4x1024xf32>, vector<4x1024xf32>, vector<4x1024xf32>, vector<4x1024xf32> -> vector<44x1024xf32>
    %80 = tpu.concatenate %78, %79 in 0 : vector<64x1024xf32>, vector<44x1024xf32> -> vector<108x1024xf32>
    %c0_12 = arith.constant 0 : index
    %c0_13 = arith.constant 0 : index
    %81 = vector.load %arg3[%c0_12, %c0_13] : memref<8x108xf32, #tpu.memory_space<vmem>>, vector<8x108xf32>
    %cst = arith.constant dense<0.000000e+00> : vector<8x1024xf32>
    %82 = tpu.matmul %81, %80, %cst {dimension_numbers = #tpu.dot_dimension_numbers<[1], [0], [0], [1], [0, 0, 1, 1], [], []>} : vector<8x108xf32>, vector<108x1024xf32>, vector<8x1024xf32> -> vector<8x1024xf32>
    %c0_14 = arith.constant 0 : index
    %c0_15 = arith.constant 0 : index
    %83 = vector.load %arg4[%c0_14, %c0_15] : memref<8x1xf32, #tpu.memory_space<vmem>>, vector<8x1xf32>
    %84 = vector.broadcast %83 : vector<8x1xf32> to vector<8x1024xf32>
    %85 = arith.addf %82, %84 : vector<8x1024xf32>
    %cst_16 = arith.constant 0.000000e+00 : f32
    %86 = vector.broadcast %cst_16 : f32 to vector<8x1024xf32>
    %87 = arith.maximumf %85, %86 : vector<8x1024xf32>
    %c0_17 = arith.constant 0 : index
    %c0_18 = arith.constant 0 : index
    %c0_19 = arith.constant 0 : index
    %88 = vector.load %arg5[%c0_17, %c0_18, %c0_19] : memref<1x8x1024xf32, #tpu.memory_space<vmem>>, vector<1x8x1024xf32>
    %89 = vector.shape_cast %88 : vector<1x8x1024xf32> to vector<8x1024xf32>
    %90 = vector.shape_cast %87 : vector<8x1024xf32> to vector<1x8x1024xf32>
    tpu.vector_store %arg5[%c0_17, %c0_18, %c0_19], %90 {strides = array<i32>} : memref<1x8x1024xf32, #tpu.memory_space<vmem>>, vector<1x8x1024xf32>,
    return
  }
  func.func @transform_1(%arg0: i32, %arg1: i32) -> (i32, i32) {
    %c0_i32 = arith.constant 0 : i32
    %c0_i32_0 = arith.constant 0 : i32
    %c0_i32_1 = arith.constant 0 : i32
    return %c0_i32, %c0_i32_0 : i32, i32
  }
  func.func @transform_2(%arg0: i32, %arg1: i32) -> (i32, i32) {
    %c0_i32 = arith.constant 0 : i32
    %c0_i32_0 = arith.constant 0 : i32
    %c0_i32_1 = arith.constant 0 : i32
    return %c0_i32, %c0_i32_0 : i32, i32
  }
  func.func @transform_3(%arg0: i32, %arg1: i32) -> (i32, i32, i32) {
    %c0_i32 = arith.constant 0 : i32
    %c0_i32_0 = arith.constant 0 : i32
    return %arg0, %c0_i32, %arg1 : i32, i32, i32
  }
}

</mosaic_0001>

<llo_original>
// kernel: tpu_custom_call.1
$region0: #{tpu_custom_call.1}
  #allocation0 [shape = 'u32[]', space=smem, size = 0x4, offset = 0x4, fixed_abs, tag = 'smem constant byte address 0x4 - core index']
  #allocation1 [shape = 'u32[144,128]{1,0:T(1,128)}', space=vmem, size = 0x12000, scoped, tag = 'internal scratch']
  #allocation2 [shape = 'f32[2,4,1280]{2,1,0:T(4,128)}', space=vmem, size = 0xa000, scoped, tag = 'scratch operand']
  #allocation3 [shape = 's32[2]{0}', space=sflag, size = 0x8, scoped, tag = 'scratch operand']
  #allocation6 [shape = 's32[]', space=sflag, size = 0x4, offset = 0, fixed_abs, tag = 'sflag constant byte address 0x0 - dummy sync flag']
  #allocation7 [shape = 's32[]', space=sflag, size = 0x4, offset = 0, fixed_abs, tag = 'sflag constant byte address 0x0 - dummy sync flag']
  #allocation8 [shape = 'u32[]', space=smem, size = 0x4, offset = 0x44, fixed_abs, tag = 'smem constant byte address 0x44 - assertion arg 0']
  #allocation9 [shape = 'u32[]', space=smem, size = 0x4, offset = 0x48, fixed_abs, tag = 'smem constant byte address 0x48 - assertion arg 1']
  #allocation10 [shape = 's32[]', space=sflag, size = 0x4, offset = 0, fixed_abs, tag = 'sflag constant byte address 0x0 - dummy sync flag']
  #allocation11 [shape = 's32[]', space=sflag, size = 0x4, offset = 0, fixed_abs, tag = 'sflag constant byte address 0x0 - dummy sync flag']
  %s0 = inlined_call_operand.hbm [shape: f32[2,4,2304], index: 0, kind: input, shape index: {}]
  %s1 = inlined_call_operand.vmem [shape: f32[8,108], index: 1, kind: input, shape index: {}]
  %s2 = inlined_call_operand.vmem [shape: f32[8,1], index: 2, kind: input, shape index: {}]
  %s3 = inlined_call_operand.hbm [shape: f32[2,8,2048], index: 3, kind: output, shape index: {}]
  %s4 = sld [smem:[#allocation0]]
  $region57: #{tpu_custom_call.1} parent=0
    _
  %s6 = ssub.s32 1, %s4
  %s7 = scalar_select 0, %s6, %s4
  $region1: #{tpu_custom_call.1} parent=0
    #allocation4 [shape = 'u8[65536]{0}', space=vmem, size = 0x10000, scoped, tag = 'output window, operand 0']
    #allocation5 [shape = 's32[2]{0}', space=sflag, size = 0x8, scoped, tag = 'scoped memory for tpu_custom_call.1']
    %8 = vsyncpa [#allocation5], 0
    %s9 = scalar_lea.sflag [#allocation5], 1
    %10 = vsyncpa %s9, 0
    loop: start=0, step=1, limit=6
    $region2: #{tpu_custom_call.1} parent=1 // loop_pre_header
      _
    $region3: #{tpu_custom_call.1} parent=1 // loop_header
      %s12 = sphi 0, %s16
      %p13 = scmp.ge.s32.totalorder %s12, 6
      %s19 = sphi 0, %s31
      %s20 = sphi 0, %s27
      %s21 = sphi 0, %s19
      %s22 = sphi 0, %s20
      %s23 = sphi 0, %s21
      %s24 = sphi 0, %s22
      %s32 = sphi 0, %s32
      %s34 = sphi 0, %s32
      %s35 = sphi 0, %s34
      %s49 = sphi 0, %s35
      %s53 = sphi 0, %s53
      %s55 = sphi 0, %s53
      %s56 = sphi 0, %s55
      %s70 = sphi 0, %s56
      %s78 = sphi 0, %s80
      %s81 = sphi 0, %s78
      %s82 = sphi 0, %s81
      %s98 = sphi 0, %s82
    $region4: #{tpu_custom_call.1} parent=1 // loop_header_branch
      %15 = sbr.rel (%p13) target = $region8
    $region5: #{tpu_custom_call.1} parent=1 // loop_body
      %s17 = ssub.s32 %s12, 1
      %s18 = ssub.s32 %s12, 2
      %s25 = sadd.s32 1, %s20
      %p26 = scmp.ge.s32.totalorder %s25, 2
      %s27 = scalar_select %p26, 0, %s25
      %s28 = sadd.s32 1, %s19
      %s29 = scalar_select %p26, %s28, %s19
      %p30 = scmp.ge.s32.totalorder %s29, 2
      %s31 = scalar_select %p30, 0, %s29
      %s33 = sadd.s32 %s32, 1
      %p36 = scmp.eq.s32.totalorder %s12, 3
      %p37 = scmp.ne.s32.totalorder %s32, %s34
      %p38 = scmp.eq.s32.totalorder %s12, 0
      %p39 = por %p37, %p38
      %p40 = scmp.ne.s32.totalorder %s32, %s34
      %p41 = scmp.eq.s32.totalorder %s17, 3
      %p42 = por %p40, %p41
      %p43 = scmp.ne.s32.totalorder %s34, %s35
      %p44 = scmp.eq.s32.totalorder %s17, 0
      %p45 = por %p43, %p44
      %p46 = scmp.ne.s32.totalorder %s34, %s35
      %p47 = scmp.eq.s32.totalorder %s18, 3
      %p48 = por %p46, %p47
      %p50 = scmp.ne.s32.totalorder %s35, %s49
      %p51 = scmp.eq.s32.totalorder %s18, 0
      %p52 = por %p50, %p51
      %s54 = sadd.s32 %s53, 1
      %p57 = scmp.eq.s32.totalorder %s12, 3
      %p58 = scmp.ne.s32.totalorder %s53, %s55
      %p59 = scmp.eq.s32.totalorder %s12, 0
      %p60 = por %p58, %p59
      %p61 = scmp.ne.s32.totalorder %s53, %s55
      %p62 = scmp.eq.s32.totalorder %s17, 3
      %p63 = por %p61, %p62
      %p64 = scmp.ne.s32.totalorder %s55, %s56
      %p65 = scmp.eq.s32.totalorder %s17, 0
      %p66 = por %p64, %p65
      %p67 = scmp.ne.s32.totalorder %s55, %s56
      %p68 = scmp.eq.s32.totalorder %s18, 3
      %p69 = por %p67, %p68
      %p71 = scmp.ne.s32.totalorder %s56, %s70
      %p72 = scmp.eq.s32.totalorder %s18, 0
      %p73 = por %p71, %p72
      %s74 = ssub.s32 %s19, %s31
      %s75 = ssub.s32 %s20, %s27
      %s76 = sor.u32 %s74, %s75
      %p77 = scmp.eq.s32.totalorder %s76, 0
      %s79 = sadd.s32 %s78, 1
      %s80 = scalar_select %p77, %s78, %s79
      %p83 = pneg %p77
      %p84 = scmp.eq.s32.totalorder %s12, 3
      %p85 = por %p83, %p84
      %p86 = scmp.ne.s32.totalorder %s78, %s81
      %p87 = scmp.eq.s32.totalorder %s12, 0
      %p88 = por %p86, %p87
      %p89 = scmp.ne.s32.totalorder %s78, %s81
      %p90 = scmp.eq.s32.totalorder %s17, 3
      %p91 = por %p89, %p90
      %p92 = scmp.ne.s32.totalorder %s81, %s82
      %p93 = scmp.eq.s32.totalorder %s17, 0
      %p94 = por %p92, %p93
      %p95 = scmp.ne.s32.totalorder %s81, %s82
      %p96 = scmp.eq.s32.totalorder %s18, 3
      %p97 = por %p95, %p96
      %p99 = scmp.ne.s32.totalorder %s82, %s98
      %p100 = scmp.eq.s32.totalorder %s18, 0
      %p101 = por %p99, %p100
      %p102 = scmp.le.s32.totalorder 1, %s12
      %p103 = scmp.lt.s32.totalorder %s12, 5
      %p104 = pnand %p102, %p103
      %p105 = pneg %p104
      // Predicated region
      $region9: #{tpu_custom_call.1} parent=5 // pred_check
        _
      $region10: #{tpu_custom_call.1} parent=5 // pred_check_branch
        %107 = sbr.rel (%p104) target = $region12
      $region11: #{tpu_custom_call.1} parent=5 // pred_region
        %s108 = ssub.s32 %s12, 1
        // Predicated region
        $region13: #{tpu_custom_call.1} parent=11 // pred_check
          %p109 = pneg %p45
        $region14: #{tpu_custom_call.1} parent=11 // pred_check_branch
          %111 = sbr.rel (%p109) target = $region16
        $region15: #{tpu_custom_call.1} parent=11 // pred_region
          _
        $region16: #{tpu_custom_call.1} parent=11 // pred_fallthru
          _
        // Predicated region
        $region17: #{tpu_custom_call.1} parent=11 // pred_check
          %p112 = pneg %p66
        $region18: #{tpu_custom_call.1} parent=11 // pred_check_branch
          %114 = sbr.rel (%p112) target = $region20
        $region19: #{tpu_custom_call.1} parent=11 // pred_region
          _
        $region20: #{tpu_custom_call.1} parent=11 // pred_fallthru
          _
      $region12: #{tpu_custom_call.1} parent=5 // pred_fallthru
        _
      %p115 = scmp.lt.s32.totalorder %s12, 4
      // Predicated region
      $region21: #{tpu_custom_call.1} parent=5 // pred_check
        %p116 = pneg %p115
      $region22: #{tpu_custom_call.1} parent=5 // pred_check_branch
        %118 = sbr.rel (%p116) target = $region24
      $region23: #{tpu_custom_call.1} parent=5 // pred_region
        _
      $region24: #{tpu_custom_call.1} parent=5 // pred_fallthru
        _
      %p119 = scmp.le.s32.totalorder 1, %s12
      %p120 = scmp.lt.s32.totalorder %s12, 5
      %p121 = pnand %p119, %p120
      %p122 = pneg %p121
      // Predicated region
      $region25: #{tpu_custom_call.1} parent=5 // pred_check
        _
      $region26: #{tpu_custom_call.1} parent=5 // pred_check_branch
        %124 = sbr.rel (%p121) target = $region28
      $region27: #{tpu_custom_call.1} parent=5 // pred_region
        %s125 = ssub.s32 %s12, 1
        %p126 = pneg %p45
        %p127 = pneg %p42
        %p128 = pneg %p66
        %p129 = pneg %p63
        %p130 = pneg %p94
        %p131 = pneg %p91
        %s132 = sand.u32 %s81, 1
        %s133 = scalar_lea.sflag [#allocation5], %s132
        %s134 = sand.u32 %s81, 1
        %s135 = smul.addr %s134, 64
        %s136 = scalar_lea.vmem [#allocation4], %s135
        %s137 = smul.u32 8, %s22
        %p138 = scmp.lt.s32.totalorder %s22, 0
        %s139 = ssub.s32 0, %s22
        %s140 = scalar_select %p138, %s139, %s22
        %s141 = sand.u32 %s140, 1
        %s142 = ssub.s32 0, %s141
        %s143 = scalar_select %p138, %s142, %s141
        %p144 = scmp.ne.s32.totalorder %s143, 0
        %p145 = scmp.lt.s32.totalorder %s143, 0
        %p146 = pnand %p145, %p144
        %p147 = pneg %p146
        %s148 = sadd.s32 %s143, 2
        %s149 = scalar_select %p147, %s148, %s143
        %p150 = scmp.eq.s32.totalorder %s22, 0
        // Predicated region
        $region29: #{tpu_custom_call.1} parent=27 // pred_check
          %p151 = pneg %p150
        $region30: #{tpu_custom_call.1} parent=27 // pred_check_branch
          %153 = sbr.rel (%p151) target = $region32
        $region31: #{tpu_custom_call.1} parent=27 // pred_region
          %s154 = smul.u32 %s21, 18
          %s155 = smul.addr %s154, 64
          %s156 = scalar_lea.hbm %s0, %s155
          // Predicated region
          $region33: #{tpu_custom_call.1} parent=31 // pred_check
            _
          $region34: #{tpu_custom_call.1} parent=31 // pred_check_branch
            %158 = sbr.rel target = $region36
          $region35: #{tpu_custom_call.1} parent=31 // pred_region
            %159 = sst [smem:[#allocation8]] [#allocation7]
            %160 = sst [smem:[#allocation9]] [#allocation6]
          $region36: #{tpu_custom_call.1} parent=31 // pred_fallthru
            _
          %162 = shalt.err (0)
          %s164 = sshll.u32 [#allocation2], 4
          %s165 = int_to_ptr.vmem [resolvable:$true] %s164
          %167 = dma.hbm_to_vmem [thread:$0]  %s156, 640, %s165, [#allocation3]
        $region32: #{tpu_custom_call.1} parent=27 // pred_fallthru
          _
        %s168 = sadd.s32 %s22, 1
        %p169 = scmp.lt.s32.totalorder %s168, 2
        // Predicated region
        $region37: #{tpu_custom_call.1} parent=27 // pred_check
          %p170 = pneg %p169
        $region38: #{tpu_custom_call.1} parent=27 // pred_check_branch
          %172 = sbr.rel (%p170) target = $region40
        $region39: #{tpu_custom_call.1} parent=27 // pred_region
          %s173 = ssub.s32 1, %s149
          %s174 = smul.u32 %s168, 1024
          %s175 = sshra.s32 %s174, 7
          %s176 = sand.u32 %s174, 127
          %s177 = smul.u32 %s21, 18
          %s178 = sadd.s32 %s175, %s177
          %s179 = smul.addr %s178, 64
          %s180 = scalar_lea.hbm %s0, %s179
          %s181 = smul.u32 %s173, 10
          %s182 = smul.addr %s181, 4
          %s183 = scalar_lea.vmem [#allocation2], %s182
          %s184 = scalar_lea.sflag [#allocation3], %s173
          // Predicated region
          $region41: #{tpu_custom_call.1} parent=39 // pred_check
            _
          $region42: #{tpu_custom_call.1} parent=39 // pred_check_branch
            %186 = sbr.rel target = $region44
          $region43: #{tpu_custom_call.1} parent=39 // pred_region
            %187 = sst [smem:[#allocation8]] [#allocation11]
            %188 = sst [smem:[#allocation9]] [#allocation10]
          $region44: #{tpu_custom_call.1} parent=39 // pred_fallthru
            _
          %190 = shalt.err (0)
          %s192 = sshll.u32 %s183, 4
          %s193 = int_to_ptr.vmem [resolvable:$true] %s192
          %195 = dma.hbm_to_vmem [thread:$0]  %s180, 640, %s193, %s184
        $region40: #{tpu_custom_call.1} parent=27 // pred_fallthru
          _
        %s196 = smul.u32 %s149, 10
        %s197 = smul.addr %s196, 4
        %s198 = scalar_lea.vmem [#allocation2], %s197
        %s199 = scalar_lea.sflag [#allocation3], %s149
        %s200 = smul.u32 4, 1
        %s201 = smul.u32 %s200, 10
        %s202 = sshll.u32 %s201, 4
        %203 = dma.done %s199, %s202
        %v204 = vld [vmem:[%s198] sm:$0xff]
        %v205 = vld [vmem:[%s198 + $0x8] sm:$0xff]
        %v206 = vld [vmem:[%s198 + $0x10] sm:$0xff]
        %v207 = vld [vmem:[%s198 + $0x18] sm:$0xff]
        %v208 = vld [vmem:[%s198 + $0x20] sm:$0xff]
        %v210 = vcombine.high %v208, %v208
        %211 = vrot.lane.b32.xlu0 %v210, 11
        %v212 = vpop.permute.xlu0 %211
        %v218 = vcombine.high %v204, %v204
        %v219 = vcombine.high %v205, %v205
        %v220 = vcombine.high %v206, %v206
        %v221 = vcombine.high %v207, %v207
        %222 = vrot.lane.b32.xlu0 %v204, 11
        %v223 = vpop.permute.xlu0 %222
        %224 = vrot.lane.b32.xlu0 %v218, 11
        %v225 = vpop.permute.xlu0 %224
        %226 = vrot.lane.b32.xlu0 %v205, 11
        %v227 = vpop.permute.xlu0 %226
        %228 = vrot.lane.b32.xlu0 %v219, 11
        %v229 = vpop.permute.xlu0 %228
        %230 = vrot.lane.b32.xlu0 %v206, 11
        %v231 = vpop.permute.xlu0 %230
        %232 = vrot.lane.b32.xlu0 %v220, 11
        %v233 = vpop.permute.xlu0 %232
        %234 = vrot.lane.b32.xlu0 %v207, 11
        %v235 = vpop.permute.xlu0 %234
        %236 = vrot.lane.b32.xlu0 %v221, 11
        %v237 = vpop.permute.xlu0 %236
        %238 = vrot.lane.b32.xlu0 %v208, 11
        %v239 = vpop.permute.xlu0 %238
        %vm240 = vcmask 89088
        %v241 = vsel %vm240, %v223, %v225
        %v242 = vsel %vm240, %v225, %v227
        %v243 = vsel %vm240, %v227, %v229
        %v244 = vsel %vm240, %v229, %v231
        %v245 = vsel %vm240, %v231, %v233
        %v246 = vsel %vm240, %v233, %v235
        %v247 = vsel %vm240, %v235, %v237
        %v248 = vsel %vm240, %v237, %v239
        %v249 = vsel %vm240, %v239, %v212
        %v260 = vsel %vm240, %v212, %v223
        %261 = vrot.lane.b32.xlu0 %v210, 10
        %v262 = vpop.permute.xlu0 %261
        %264 = vrot.lane.b32.xlu0 %v204, 10
        %v265 = vpop.permute.xlu0 %264
        %266 = vrot.lane.b32.xlu0 %v218, 10
        %v267 = vpop.permute.xlu0 %266
        %268 = vrot.lane.b32.xlu0 %v205, 10
        %v269 = vpop.permute.xlu0 %268
        %270 = vrot.lane.b32.xlu0 %v219, 10
        %v271 = vpop.permute.xlu0 %270
        %272 = vrot.lane.b32.xlu0 %v206, 10
        %v273 = vpop.permute.xlu0 %272
        %274 = vrot.lane.b32.xlu0 %v220, 10
        %v275 = vpop.permute.xlu0 %274
        %276 = vrot.lane.b32.xlu0 %v207, 10
        %v277 = vpop.permute.xlu0 %276
        %278 = vrot.lane.b32.xlu0 %v221, 10
        %v279 = vpop.permute.xlu0 %278
        %280 = vrot.lane.b32.xlu0 %v208, 10
        %v281 = vpop.permute.xlu0 %280
        %vm282 = vcmask 80896
        %v283 = vsel %vm282, %v265, %v267
        %v284 = vsel %vm282, %v267, %v269
        %v285 = vsel %vm282, %v269, %v271
        %v286 = vsel %vm282, %v271, %v273
        %v287 = vsel %vm282, %v273, %v275
        %v288 = vsel %vm282, %v275, %v277
        %v289 = vsel %vm282, %v277, %v279
        %v290 = vsel %vm282, %v279, %v281
        %v291 = vsel %vm282, %v281, %v262
        %v301 = vsel %vm282, %v262, %v265
        %302 = vrot.lane.b32.xlu0 %v210, 9
        %v303 = vpop.permute.xlu0 %302
        %305 = vrot.lane.b32.xlu0 %v204, 9
        %v306 = vpop.permute.xlu0 %305
        %307 = vrot.lane.b32.xlu0 %v218, 9
        %v308 = vpop.permute.xlu0 %307
        %309 = vrot.lane.b32.xlu0 %v205, 9
        %v310 = vpop.permute.xlu0 %309
        %311 = vrot.lane.b32.xlu0 %v219, 9
        %v312 = vpop.permute.xlu0 %311
        %313 = vrot.lane.b32.xlu0 %v206, 9
        %v314 = vpop.permute.xlu0 %313
        %315 = vrot.lane.b32.xlu0 %v220, 9
        %v316 = vpop.permute.xlu0 %315
        %317 = vrot.lane.b32.xlu0 %v207, 9
        %v318 = vpop.permute.xlu0 %317
        %319 = vrot.lane.b32.xlu0 %v221, 9
        %v320 = vpop.permute.xlu0 %319
        %321 = vrot.lane.b32.xlu0 %v208, 9
        %v322 = vpop.permute.xlu0 %321
        %vm323 = vcmask 72704
        %v324 = vsel %vm323, %v306, %v308
        %v325 = vsel %vm323, %v308, %v310
        %v326 = vsel %vm323, %v310, %v312
        %v327 = vsel %vm323, %v312, %v314
        %v328 = vsel %vm323, %v314, %v316
        %v329 = vsel %vm323, %v316, %v318
        %v330 = vsel %vm323, %v318, %v320
        %v331 = vsel %vm323, %v320, %v322
        %v332 = vsel %vm323, %v322, %v303
        %v343 = vsel %vm323, %v303, %v306
        %344 = vrot.lane.b32.xlu0 %v210, 1
        %v345 = vpop.permute.xlu0 %344
        %347 = vrot.lane.b32.xlu0 %v204, 1
        %v348 = vpop.permute.xlu0 %347
        %349 = vrot.lane.b32.xlu0 %v218, 1
        %v350 = vpop.permute.xlu0 %349
        %351 = vrot.lane.b32.xlu0 %v205, 1
        %v352 = vpop.permute.xlu0 %351
        %353 = vrot.lane.b32.xlu0 %v219, 1
        %v354 = vpop.permute.xlu0 %353
        %355 = vrot.lane.b32.xlu0 %v206, 1
        %v356 = vpop.permute.xlu0 %355
        %357 = vrot.lane.b32.xlu0 %v220, 1
        %v358 = vpop.permute.xlu0 %357
        %359 = vrot.lane.b32.xlu0 %v207, 1
        %v360 = vpop.permute.xlu0 %359
        %361 = vrot.lane.b32.xlu0 %v221, 1
        %v362 = vpop.permute.xlu0 %361
        %363 = vrot.lane.b32.xlu0 %v208, 1
        %v364 = vpop.permute.xlu0 %363
        %vm365 = vcmask 7168
        %v366 = vsel %vm365, %v348, %v350
        %v367 = vsel %vm365, %v350, %v352
        %v368 = vsel %vm365, %v352, %v354
        %v369 = vsel %vm365, %v354, %v356
        %v370 = vsel %vm365, %v356, %v358
        %v371 = vsel %vm365, %v358, %v360
        %v372 = vsel %vm365, %v360, %v362
        %v373 = vsel %vm365, %v362, %v364
        %v374 = vsel %vm365, %v364, %v345
        %v384 = vsel %vm365, %v345, %v348
        %385 = vrot.lane.b32.xlu0 %v204, 127
        %v386 = vpop.permute.xlu0 %385
        %387 = vrot.lane.b32.xlu0 %v218, 127
        %v388 = vpop.permute.xlu0 %387
        %389 = vrot.lane.b32.xlu0 %v205, 127
        %v390 = vpop.permute.xlu0 %389
        %391 = vrot.lane.b32.xlu0 %v219, 127
        %v392 = vpop.permute.xlu0 %391
        %393 = vrot.lane.b32.xlu0 %v206, 127
        %v394 = vpop.permute.xlu0 %393
        %395 = vrot.lane.b32.xlu0 %v220, 127
        %v396 = vpop.permute.xlu0 %395
        %397 = vrot.lane.b32.xlu0 %v207, 127
        %v398 = vpop.permute.xlu0 %397
        %399 = vrot.lane.b32.xlu0 %v221, 127
        %v400 = vpop.permute.xlu0 %399
        %401 = vrot.lane.b32.xlu0 %v208, 127
        %v402 = vpop.permute.xlu0 %401
        %403 = vrot.lane.b32.xlu0 %v210, 127
        %v404 = vpop.permute.xlu0 %403
        %vm405 = vcmask 1039360
        %v406 = vsel %vm405, %v386, %v388
        %v407 = vsel %vm405, %v388, %v390
        %v408 = vsel %vm405, %v390, %v392
        %v409 = vsel %vm405, %v392, %v394
        %v410 = vsel %vm405, %v394, %v396
        %v411 = vsel %vm405, %v396, %v398
        %v412 = vsel %vm405, %v398, %v400
        %v413 = vsel %vm405, %v400, %v402
        %v414 = vsel %vm405, %v402, %v404
        %v425 = vsel %vm405, %v404, %v386
        %426 = vrot.lane.b32.xlu0 %v204, 119
        %v427 = vpop.permute.xlu0 %426
        %428 = vrot.lane.b32.xlu0 %v218, 119
        %v429 = vpop.permute.xlu0 %428
        %430 = vrot.lane.b32.xlu0 %v205, 119
        %v431 = vpop.permute.xlu0 %430
        %432 = vrot.lane.b32.xlu0 %v219, 119
        %v433 = vpop.permute.xlu0 %432
        %434 = vrot.lane.b32.xlu0 %v206, 119
        %v435 = vpop.permute.xlu0 %434
        %436 = vrot.lane.b32.xlu0 %v220, 119
        %v437 = vpop.permute.xlu0 %436
        %438 = vrot.lane.b32.xlu0 %v207, 119
        %v439 = vpop.permute.xlu0 %438
        %440 = vrot.lane.b32.xlu0 %v221, 119
        %v441 = vpop.permute.xlu0 %440
        %442 = vrot.lane.b32.xlu0 %v208, 119
        %v443 = vpop.permute.xlu0 %442
        %444 = vrot.lane.b32.xlu0 %v210, 119
        %v445 = vpop.permute.xlu0 %444
        %vm446 = vcmask 973824
        %v447 = vsel %vm446, %v427, %v429
        %v448 = vsel %vm446, %v429, %v431
        %v449 = vsel %vm446, %v431, %v433
        %v450 = vsel %vm446, %v433, %v435
        %v451 = vsel %vm446, %v435, %v437
        %v452 = vsel %vm446, %v437, %v439
        %v453 = vsel %vm446, %v439, %v441
        %v454 = vsel %vm446, %v441, %v443
        %v455 = vsel %vm446, %v443, %v445
        %v467 = vsel %vm446, %v445, %v427
        %468 = vrot.lane.b32.xlu0 %v204, 118
        %v469 = vpop.permute.xlu0 %468
        %470 = vrot.lane.b32.xlu0 %v218, 118
        %v471 = vpop.permute.xlu0 %470
        %472 = vrot.lane.b32.xlu0 %v205, 118
        %v473 = vpop.permute.xlu0 %472
        %474 = vrot.lane.b32.xlu0 %v219, 118
        %v475 = vpop.permute.xlu0 %474
        %476 = vrot.lane.b32.xlu0 %v206, 118
        %v477 = vpop.permute.xlu0 %476
        %478 = vrot.lane.b32.xlu0 %v220, 118
        %v479 = vpop.permute.xlu0 %478
        %480 = vrot.lane.b32.xlu0 %v207, 118
        %v481 = vpop.permute.xlu0 %480
        %482 = vrot.lane.b32.xlu0 %v221, 118
        %v483 = vpop.permute.xlu0 %482
        %484 = vrot.lane.b32.xlu0 %v208, 118
        %v485 = vpop.permute.xlu0 %484
        %486 = vrot.lane.b32.xlu0 %v210, 118
        %v487 = vpop.permute.xlu0 %486
        %vm488 = vcmask 965632
        %v489 = vsel %vm488, %v469, %v471
        %v490 = vsel %vm488, %v471, %v473
        %v491 = vsel %vm488, %v473, %v475
        %v492 = vsel %vm488, %v475, %v477
        %v493 = vsel %vm488, %v477, %v479
        %v494 = vsel %vm488, %v479, %v481
        %v495 = vsel %vm488, %v481, %v483
        %v496 = vsel %vm488, %v483, %v485
        %v497 = vsel %vm488, %v485, %v487
        %v508 = vsel %vm488, %v487, %v469
        %509 = vrot.lane.b32.xlu0 %v204, 117
        %v510 = vpop.permute.xlu0 %509
        %511 = vrot.lane.b32.xlu0 %v218, 117
        %v512 = vpop.permute.xlu0 %511
        %513 = vrot.lane.b32.xlu0 %v205, 117
        %v514 = vpop.permute.xlu0 %513
        %515 = vrot.lane.b32.xlu0 %v219, 117
        %v516 = vpop.permute.xlu0 %515
        %517 = vrot.lane.b32.xlu0 %v206, 117
        %v518 = vpop.permute.xlu0 %517
        %519 = vrot.lane.b32.xlu0 %v220, 117
        %v520 = vpop.permute.xlu0 %519
        %521 = vrot.lane.b32.xlu0 %v207, 117
        %v522 = vpop.permute.xlu0 %521
        %523 = vrot.lane.b32.xlu0 %v221, 117
        %v524 = vpop.permute.xlu0 %523
        %525 = vrot.lane.b32.xlu0 %v208, 117
        %v526 = vpop.permute.xlu0 %525
        %527 = vrot.lane.b32.xlu0 %v210, 117
        %v528 = vpop.permute.xlu0 %527
        %vm529 = vcmask 957440
        %v530 = vsel %vm529, %v510, %v512
        %v531 = vsel %vm529, %v512, %v514
        %v532 = vsel %vm529, %v514, %v516
        %v533 = vsel %vm529, %v516, %v518
        %v534 = vsel %vm529, %v518, %v520
        %v535 = vsel %vm529, %v520, %v522
        %v536 = vsel %vm529, %v522, %v524
        %v537 = vsel %vm529, %v524, %v526
        %v538 = vsel %vm529, %v526, %v528
        %v549 = vsel %vm529, %v528, %v510
        %v551 = vrot.slane %v301, 4
        %v552 = vrot.slane %v283, 4
        %v553 = vrot.slane %v284, 4
        %v554 = vrot.slane %v285, 4
        %v555 = vrot.slane %v286, 4
        %v556 = vrot.slane %v287, 4
        %v557 = vrot.slane %v288, 4
        %v558 = vrot.slane %v289, 4
        %v568 = vrot.slane %v384, 4
        %v569 = vrot.slane %v366, 4
        %v570 = vrot.slane %v367, 4
        %v571 = vrot.slane %v368, 4
        %v572 = vrot.slane %v369, 4
        %v573 = vrot.slane %v370, 4
        %v574 = vrot.slane %v371, 4
        %v575 = vrot.slane %v372, 4
        %v588 = vrot.slane %v406, 4
        %v589 = vrot.slane %v407, 4
        %v590 = vrot.slane %v408, 4
        %v591 = vrot.slane %v409, 4
        %v592 = vrot.slane %v410, 4
        %v593 = vrot.slane %v411, 4
        %v594 = vrot.slane %v412, 4
        %v595 = vrot.slane %v413, 4
        %v604 = vrot.slane %v489, 4
        %v605 = vrot.slane %v490, 4
        %v606 = vrot.slane %v491, 4
        %v607 = vrot.slane %v492, 4
        %v608 = vrot.slane %v493, 4
        %v609 = vrot.slane %v494, 4
        %v610 = vrot.slane %v495, 4
        %v611 = vrot.slane %v496, 4
        %v620 = vrot.slane %v241, 4
        %v621 = vrot.slane %v242, 4
        %v622 = vrot.slane %v243, 4
        %v623 = vrot.slane %v244, 4
        %v624 = vrot.slane %v245, 4
        %v625 = vrot.slane %v246, 4
        %v626 = vrot.slane %v247, 4
        %v627 = vrot.slane %v248, 4
        %v636 = vrot.slane %v324, 4
        %v637 = vrot.slane %v325, 4
        %v638 = vrot.slane %v326, 4
        %v639 = vrot.slane %v327, 4
        %v640 = vrot.slane %v328, 4
        %v641 = vrot.slane %v329, 4
        %v642 = vrot.slane %v330, 4
        %v643 = vrot.slane %v331, 4
        %v652 = vcombine.low %v205, %v205
        %v653 = vcombine.low %v206, %v206
        %v654 = vcombine.low %v207, %v207
        %v655 = vcombine.low %v208, %v208
        %v660 = vrot.slane %v448, 4
        %v661 = vrot.slane %v449, 4
        %v662 = vrot.slane %v450, 4
        %v663 = vrot.slane %v451, 4
        %v664 = vrot.slane %v452, 4
        %v665 = vrot.slane %v453, 4
        %v666 = vrot.slane %v454, 4
        %v667 = vrot.slane %v455, 4
        %vm676 = vcmask 1043456
        %v677 = vsel %vm676, %v260, %v551
        %v678 = vsel %vm676, %v241, %v552
        %v679 = vsel %vm676, %v242, %v553
        %v680 = vsel %vm676, %v243, %v554
        %v681 = vsel %vm676, %v244, %v555
        %v682 = vsel %vm676, %v245, %v556
        %v683 = vsel %vm676, %v246, %v557
        %v684 = vsel %vm676, %v247, %v558
        %v685 = vsel %vm676, %v343, %v568
        %v686 = vsel %vm676, %v324, %v569
        %v687 = vsel %vm676, %v325, %v570
        %v688 = vsel %vm676, %v326, %v571
        %v689 = vsel %vm676, %v327, %v572
        %v690 = vsel %vm676, %v328, %v573
        %v691 = vsel %vm676, %v329, %v574
        %v692 = vsel %vm676, %v330, %v575
        %v693 = vsel %vm676, %v204, %v588
        %v694 = vsel %vm676, %v218, %v589
        %v695 = vsel %vm676, %v205, %v590
        %v696 = vsel %vm676, %v219, %v591
        %v697 = vsel %vm676, %v206, %v592
        %v698 = vsel %vm676, %v220, %v593
        %v699 = vsel %vm676, %v207, %v594
        %v700 = vsel %vm676, %v221, %v595
        %v701 = vsel %vm676, %v447, %v604
        %v702 = vsel %vm676, %v448, %v605
        %v703 = vsel %vm676, %v449, %v606
        %v704 = vsel %vm676, %v450, %v607
        %v705 = vsel %vm676, %v451, %v608
        %v706 = vsel %vm676, %v452, %v609
        %v707 = vsel %vm676, %v453, %v610
        %v708 = vsel %vm676, %v454, %v611
        %v709 = vsel %vm676, %v530, %v620
        %v710 = vsel %vm676, %v531, %v621
        %v711 = vsel %vm676, %v532, %v622
        %v712 = vsel %vm676, %v533, %v623
        %v713 = vsel %vm676, %v534, %v624
        %v714 = vsel %vm676, %v535, %v625
        %v715 = vsel %vm676, %v536, %v626
        %v716 = vsel %vm676, %v537, %v627
        %v717 = vsel %vm676, %v283, %v636
        %v718 = vsel %vm676, %v284, %v637
        %v719 = vsel %vm676, %v285, %v638
        %v720 = vsel %vm676, %v286, %v639
        %v721 = vsel %vm676, %v287, %v640
        %v722 = vsel %vm676, %v288, %v641
        %v723 = vsel %vm676, %v289, %v642
        %v724 = vsel %vm676, %v290, %v643
        %v725 = vsel %vm676, %v366, %v204
        %v726 = vsel %vm676, %v367, %v652
        %v727 = vsel %vm676, %v368, %v205
        %v728 = vsel %vm676, %v369, %v653
        %v729 = vsel %vm676, %v370, %v206
        %v730 = vsel %vm676, %v371, %v654
        %v731 = vsel %vm676, %v372, %v207
        %v732 = vsel %vm676, %v373, %v655
        %v733 = vsel %vm676, %v407, %v660
        %v734 = vsel %vm676, %v408, %v661
        %v735 = vsel %vm676, %v409, %v662
        %v736 = vsel %vm676, %v410, %v663
        %v737 = vsel %vm676, %v411, %v664
        %v738 = vsel %vm676, %v412, %v665
        %v739 = vsel %vm676, %v413, %v666
        %v740 = vsel %vm676, %v414, %v667
        %v741 = vrot.slane %v531, 4
        %v742 = vrot.slane %v532, 4
        %v743 = vrot.slane %v533, 4
        %v744 = vrot.slane %v534, 4
        %v745 = vrot.slane %v535, 4
        %v746 = vrot.slane %v536, 4
        %v747 = vrot.slane %v537, 4
        %v748 = vrot.slane %v538, 4
        %v757 = vrot.slane %v290, 4
        %v758 = vrot.slane %v291, 4
        %v761 = vrot.slane %v373, 4
        %v762 = vrot.slane %v374, 4
        %v767 = vrot.slane %v414, 4
        %v768 = vrot.slane %v425, 4
        %v772 = vrot.slane %v497, 4
        %v773 = vrot.slane %v508, 4
        %v776 = vsel %vm676, %v490, %v741
        %v777 = vsel %vm676, %v491, %v742
        %v778 = vsel %vm676, %v492, %v743
        %v779 = vsel %vm676, %v493, %v744
        %v780 = vsel %vm676, %v494, %v745
        %v781 = vsel %vm676, %v495, %v746
        %v782 = vsel %vm676, %v496, %v747
        %v783 = vsel %vm676, %v497, %v748
        %v784 = vsel %vm676, %v248, %v757
        %v785 = vsel %vm676, %v249, %v758
        %v786 = vsel %vm676, %v331, %v761
        %v787 = vsel %vm676, %v332, %v762
        %v788 = vsel %vm676, %v208, %v767
        %v789 = vsel %vm676, %v210, %v768
        %v790 = vsel %vm676, %v455, %v772
        %v791 = vsel %vm676, %v467, %v773
        %v792 = vld [vmem:[%s1] sm:$0xff]
        %v793 = vld [vmem:[%s2] sm:$0xff]
        %795 = vset.pattern.permute.xlu0 0
        %796 = vperm.xlu0 %795, %v793
        %v797 = vpop.permute.xlu0 %796
        %vm799 = vcmask 883712
        %v801 = vsel %vm799, %v792, 0
        %v803 = vsel %vm676, %v532, 0
        %v805 = vsel %vm676, %v533, 0
        %v807 = vsel %vm676, %v534, 0
        %v809 = vsel %vm676, %v535, 0
        %v811 = vsel %vm676, %v536, 0
        %v813 = vsel %vm676, %v537, 0
        %v815 = vsel %vm676, %v538, 0
        %v818 = vsel %vm676, %v549, 0
        %820 = vmatprep.subr.mxu0 %v678
        %821 = vmatpush1.msra.mxu0 %v677
        %822 = vmatprep.subr.mxu0 %v686
        %823 = vmatpush1.msra.mxu0 %v685
        %824 = vmatprep.subr.mxu0 %v694
        %825 = vmatpush1.msra.mxu0 %v693
        %826 = vmatprep.subr.mxu0 %v702
        %827 = vmatpush1.msra.mxu0 %v701
        %828 = vmatprep.subr.mxu0 %v710
        %829 = vmatpush1.msra.mxu0 %v709
        %830 = vmatprep.subr.mxu0 %v718
        %831 = vmatpush1.msra.mxu0 %v717
        %832 = vmatprep.subr.mxu0 %v726
        %833 = vmatpush1.msra.mxu0 %v725
        %834 = vmatprep.subr.mxu0 %v734
        %835 = vmatpush1.msra.mxu0 %v733
        %836 = vmatprep.subr.mxu0 %v777
        %837 = vmatpush1.msra.mxu0 %v776
        %838 = vmatprep.subr.mxu0 %v680
        %839 = vmatpush1.msra.mxu0 %v679
        %840 = vmatprep.subr.mxu0 %v688
        %841 = vmatpush1.msra.mxu0 %v687
        %842 = vmatprep.subr.mxu0 %v696
        %843 = vmatpush1.msra.mxu0 %v695
        %844 = vmatprep.subr.mxu0 %v704
        %845 = vmatpush1.msra.mxu0 %v703
        %846 = vmatprep.subr.mxu0 %v805
        %847 = vmatpush1.msra.mxu0 %v803
        %848 = vmatprep.subr.mxu0 0.0
        %849 = vmatpush1.msra.mxu0 0.0
        %850 = vmatprep.subr.mxu0 0.0
        %851 = vmatpush1.msra.mxu0 0.0
        %852 = vmatprep.subr.mxu0 0.0
        %853 = vmatpush1.msra.mxu0 0.0
        %854 = vmatprep.subr.mxu0 0.0
        %855 = vmatpush1.msra.mxu0 0.0
        %856 = vmatprep.subr.mxu0 0.0
        %857 = vmatpush1.msra.mxu0 0.0
        %858 = vmatprep.subr.mxu0 0.0
        %859 = vmatpush1.msra.mxu0 0.0
        %860 = vmatprep.subr.mxu0 0.0
        %861 = vmatpush1.msra.mxu0 0.0
        %862 = vmatprep.subr.mxu0 0.0
        %863 = vmatpush1.msra.mxu0 0.0
        %864 = vmatprep.subr.mxu0 0.0
        %865 = vmatpush1.msra.mxu0 0.0
        %866 = vmatprep.subr.mxu0 0.0
        %867 = vmatpush1.msra.mxu0 0.0
        %868 = vmatprep.subr.mxu0 0.0
        %869 = vmatpush1.msra.mxu0 0.0
        %870 = vmatprep.subr.mxu0 0.0
        %871 = vmatpush1.msra.mxu0 0.0
        %872 = vmatprep.subr.mxu0 0.0
        %873 = vmatpush1.msra.mxu0 0.0
        %874 = vmatprep.subr.mxu0 0.0
        %875 = vmatpush1.msra.mxu0 0.0
        %876 = vmatprep.subr.mxu0 0.0
        %877 = vmatpush1.msra.mxu0 0.0
        %878 = vmatprep.subr.mxu0 0.0
        %879 = vmatpush1.msra.mxu0 0.0
        %880 = vmatprep.subr.mxu0 0.0
        %881 = vmatpush1.msra.mxu0 0.0
        %882 = vmatprep.subr.mxu0 0.0
        %883 = vmatpush1.msra.mxu0 0.0
        %884 = vmatprep.mubr.f32.mxu0 0.0
        %885 = vmatmul.mubr.f32.gmra.mrb[0].mxu0 %v801
        %v886 = vpop.f32.mrb[0].mxu0
        %v887 = vadd.f32 %v797, %v886
        %v888 = vpop.f32.mrb[0].mxu0
        %v889 = vadd.f32 %v797, %v888
        %890 = vdwg.mxu0
        %891 = vmatprep.subr.mxu0 %v680
        %892 = vmatpush1.msra.mxu0 %v679
        %893 = vmatprep.subr.mxu0 %v688
        %894 = vmatpush1.msra.mxu0 %v687
        %895 = vmatprep.subr.mxu0 %v696
        %896 = vmatpush1.msra.mxu0 %v695
        %897 = vmatprep.subr.mxu0 %v704
        %898 = vmatpush1.msra.mxu0 %v703
        %899 = vmatprep.subr.mxu0 %v712
        %900 = vmatpush1.msra.mxu0 %v711
        %901 = vmatprep.subr.mxu0 %v720
        %902 = vmatpush1.msra.mxu0 %v719
        %903 = vmatprep.subr.mxu0 %v728
        %904 = vmatpush1.msra.mxu0 %v727
        %905 = vmatprep.subr.mxu0 %v736
        %906 = vmatpush1.msra.mxu0 %v735
        %907 = vmatprep.subr.mxu0 %v779
        %908 = vmatpush1.msra.mxu0 %v778
        %909 = vmatprep.subr.mxu0 %v682
        %910 = vmatpush1.msra.mxu0 %v681
        %911 = vmatprep.subr.mxu0 %v690
        %912 = vmatpush1.msra.mxu0 %v689
        %913 = vmatprep.subr.mxu0 %v698
        %914 = vmatpush1.msra.mxu0 %v697
        %915 = vmatprep.subr.mxu0 %v706
        %916 = vmatpush1.msra.mxu0 %v705
        %917 = vmatprep.subr.mxu0 %v809
        %918 = vmatpush1.msra.mxu0 %v807
        %919 = vmatprep.subr.mxu0 0.0
        %920 = vmatpush1.msra.mxu0 0.0
        %921 = vmatprep.subr.mxu0 0.0
        %922 = vmatpush1.msra.mxu0 0.0
        %923 = vmatprep.subr.mxu0 0.0
        %924 = vmatpush1.msra.mxu0 0.0
        %925 = vmatprep.subr.mxu0 0.0
        %926 = vmatpush1.msra.mxu0 0.0
        %927 = vmatprep.subr.mxu0 0.0
        %928 = vmatpush1.msra.mxu0 0.0
        %929 = vmatprep.subr.mxu0 0.0
        %930 = vmatpush1.msra.mxu0 0.0
        %931 = vmatprep.subr.mxu0 0.0
        %932 = vmatpush1.msra.mxu0 0.0
        %933 = vmatprep.subr.mxu0 0.0
        %934 = vmatpush1.msra.mxu0 0.0
        %935 = vmatprep.subr.mxu0 0.0
        %936 = vmatpush1.msra.mxu0 0.0
        %937 = vmatprep.subr.mxu0 0.0
        %938 = vmatpush1.msra.mxu0 0.0
        %939 = vmatprep.subr.mxu0 0.0
        %940 = vmatpush1.msra.mxu0 0.0
        %941 = vmatprep.subr.mxu0 0.0
        %942 = vmatpush1.msra.mxu0 0.0
        %943 = vmatprep.subr.mxu0 0.0
        %944 = vmatpush1.msra.mxu0 0.0
        %945 = vmatprep.subr.mxu0 0.0
        %946 = vmatpush1.msra.mxu0 0.0
        %947 = vmatprep.subr.mxu0 0.0
        %948 = vmatpush1.msra.mxu0 0.0
        %949 = vmatprep.subr.mxu0 0.0
        %950 = vmatpush1.msra.mxu0 0.0
        %951 = vmatprep.subr.mxu0 0.0
        %952 = vmatpush1.msra.mxu0 0.0
        %953 = vmatprep.subr.mxu0 0.0
        %954 = vmatpush1.msra.mxu0 0.0
        %955 = vmatprep.mubr.f32.mxu0 0.0
        %956 = vmatmul.mubr.f32.gmra.mrb[0].mxu0 %v801
        %v957 = vpop.f32.mrb[0].mxu0
        %v958 = vadd.f32 %v797, %v957
        %v959 = vpop.f32.mrb[0].mxu0
        %v960 = vadd.f32 %v797, %v959
        %961 = vdwg.mxu0
        %962 = vmatprep.subr.mxu0 %v682
        %963 = vmatpush1.msra.mxu0 %v681
        %964 = vmatprep.subr.mxu0 %v690
        %965 = vmatpush1.msra.mxu0 %v689
        %966 = vmatprep.subr.mxu0 %v698
        %967 = vmatpush1.msra.mxu0 %v697
        %968 = vmatprep.subr.mxu0 %v706
        %969 = vmatpush1.msra.mxu0 %v705
        %970 = vmatprep.subr.mxu0 %v714
        %971 = vmatpush1.msra.mxu0 %v713
        %972 = vmatprep.subr.mxu0 %v722
        %973 = vmatpush1.msra.mxu0 %v721
        %974 = vmatprep.subr.mxu0 %v730
        %975 = vmatpush1.msra.mxu0 %v729
        %976 = vmatprep.subr.mxu0 %v738
        %977 = vmatpush1.msra.mxu0 %v737
        %978 = vmatprep.subr.mxu0 %v781
        %979 = vmatpush1.msra.mxu0 %v780
        %980 = vmatprep.subr.mxu0 %v684
        %981 = vmatpush1.msra.mxu0 %v683
        %982 = vmatprep.subr.mxu0 %v692
        %983 = vmatpush1.msra.mxu0 %v691
        %984 = vmatprep.subr.mxu0 %v700
        %985 = vmatpush1.msra.mxu0 %v699
        %986 = vmatprep.subr.mxu0 %v708
        %987 = vmatpush1.msra.mxu0 %v707
        %988 = vmatprep.subr.mxu0 %v813
        %989 = vmatpush1.msra.mxu0 %v811
        %990 = vmatprep.subr.mxu0 0.0
        %991 = vmatpush1.msra.mxu0 0.0
        %992 = vmatprep.subr.mxu0 0.0
        %993 = vmatpush1.msra.mxu0 0.0
        %994 = vmatprep.subr.mxu0 0.0
        %995 = vmatpush1.msra.mxu0 0.0
        %996 = vmatprep.subr.mxu0 0.0
        %997 = vmatpush1.msra.mxu0 0.0
        %998 = vmatprep.subr.mxu0 0.0
        %999 = vmatpush1.msra.mxu0 0.0
        %1000 = vmatprep.subr.mxu0 0.0
        %1001 = vmatpush1.msra.mxu0 0.0
        %1002 = vmatprep.subr.mxu0 0.0
        %1003 = vmatpush1.msra.mxu0 0.0
        %1004 = vmatprep.subr.mxu0 0.0
        %1005 = vmatpush1.msra.mxu0 0.0
        %1006 = vmatprep.subr.mxu0 0.0
        %1007 = vmatpush1.msra.mxu0 0.0
        %1008 = vmatprep.subr.mxu0 0.0
        %1009 = vmatpush1.msra.mxu0 0.0
        %1010 = vmatprep.subr.mxu0 0.0
        %1011 = vmatpush1.msra.mxu0 0.0
        %1012 = vmatprep.subr.mxu0 0.0
        %1013 = vmatpush1.msra.mxu0 0.0
        %1014 = vmatprep.subr.mxu0 0.0
        %1015 = vmatpush1.msra.mxu0 0.0
        %1016 = vmatprep.subr.mxu0 0.0
        %1017 = vmatpush1.msra.mxu0 0.0
        %1018 = vmatprep.subr.mxu0 0.0
        %1019 = vmatpush1.msra.mxu0 0.0
        %1020 = vmatprep.subr.mxu0 0.0
        %1021 = vmatpush1.msra.mxu0 0.0
        %1022 = vmatprep.subr.mxu0 0.0
        %1023 = vmatpush1.msra.mxu0 0.0
        %1024 = vmatprep.subr.mxu0 0.0
        %1025 = vmatpush1.msra.mxu0 0.0
        %1026 = vmatprep.mubr.f32.mxu0 0.0
        %1027 = vmatmul.mubr.f32.gmra.mrb[0].mxu0 %v801
        %v1028 = vpop.f32.mrb[0].mxu0
        %v1029 = vadd.f32 %v797, %v1028
        %v1030 = vpop.f32.mrb[0].mxu0
        %v1031 = vadd.f32 %v797, %v1030
        %1032 = vdwg.mxu0
        %1033 = vmatprep.subr.mxu0 %v684
        %1034 = vmatpush1.msra.mxu0 %v683
        %1035 = vmatprep.subr.mxu0 %v692
        %1036 = vmatpush1.msra.mxu0 %v691
        %1037 = vmatprep.subr.mxu0 %v700
        %1038 = vmatpush1.msra.mxu0 %v699
        %1039 = vmatprep.subr.mxu0 %v708
        %1040 = vmatpush1.msra.mxu0 %v707
        %1041 = vmatprep.subr.mxu0 %v716
        %1042 = vmatpush1.msra.mxu0 %v715
        %1043 = vmatprep.subr.mxu0 %v724
        %1044 = vmatpush1.msra.mxu0 %v723
        %1045 = vmatprep.subr.mxu0 %v732
        %1046 = vmatpush1.msra.mxu0 %v731
        %1047 = vmatprep.subr.mxu0 %v740
        %1048 = vmatpush1.msra.mxu0 %v739
        %1049 = vmatprep.subr.mxu0 %v783
        %1050 = vmatpush1.msra.mxu0 %v782
        %1051 = vmatprep.subr.mxu0 %v785
        %1052 = vmatpush1.msra.mxu0 %v784
        %1053 = vmatprep.subr.mxu0 %v787
        %1054 = vmatpush1.msra.mxu0 %v786
        %1055 = vmatprep.subr.mxu0 %v789
        %1056 = vmatpush1.msra.mxu0 %v788
        %1057 = vmatprep.subr.mxu0 %v791
        %1058 = vmatpush1.msra.mxu0 %v790
        %1059 = vmatprep.subr.mxu0 %v818
        %1060 = vmatpush1.msra.mxu0 %v815
        %1061 = vmatprep.subr.mxu0 0.0
        %1062 = vmatpush1.msra.mxu0 0.0
        %1063 = vmatprep.subr.mxu0 0.0
        %1064 = vmatpush1.msra.mxu0 0.0
        %1065 = vmatprep.subr.mxu0 0.0
        %1066 = vmatpush1.msra.mxu0 0.0
        %1067 = vmatprep.subr.mxu0 0.0
        %1068 = vmatpush1.msra.mxu0 0.0
        %1069 = vmatprep.subr.mxu0 0.0
        %1070 = vmatpush1.msra.mxu0 0.0
        %1071 = vmatprep.subr.mxu0 0.0
        %1072 = vmatpush1.msra.mxu0 0.0
        %1073 = vmatprep.subr.mxu0 0.0
        %1074 = vmatpush1.msra.mxu0 0.0
        %1075 = vmatprep.subr.mxu0 0.0
        %1076 = vmatpush1.msra.mxu0 0.0
        %1077 = vmatprep.subr.mxu0 0.0
        %1078 = vmatpush1.msra.mxu0 0.0
        %1079 = vmatprep.subr.mxu0 0.0
        %1080 = vmatpush1.msra.mxu0 0.0
        %1081 = vmatprep.subr.mxu0 0.0
        %1082 = vmatpush1.msra.mxu0 0.0
        %1083 = vmatprep.subr.mxu0 0.0
        %1084 = vmatpush1.msra.mxu0 0.0
        %1085 = vmatprep.subr.mxu0 0.0
        %1086 = vmatpush1.msra.mxu0 0.0
        %1087 = vmatprep.subr.mxu0 0.0
        %1088 = vmatpush1.msra.mxu0 0.0
        %1089 = vmatprep.subr.mxu0 0.0
        %1090 = vmatpush1.msra.mxu0 0.0
        %1091 = vmatprep.subr.mxu0 0.0
        %1092 = vmatpush1.msra.mxu0 0.0
        %1093 = vmatprep.subr.mxu0 0.0
        %1094 = vmatpush1.msra.mxu0 0.0
        %1095 = vmatprep.subr.mxu0 0.0
        %1096 = vmatpush1.msra.mxu0 0.0
        %1097 = vmatprep.mubr.f32.mxu0 0.0
        %1098 = vmatmul.mubr.f32.gmra.mrb[0].mxu0 %v801
        %v1099 = vpop.f32.mrb[0].mxu0
        %v1100 = vadd.f32 %v797, %v1099
        %v1101 = vpop.f32.mrb[0].mxu0
        %v1102 = vadd.f32 %v797, %v1101
        %1103 = vdwg.mxu0
        %v1104 = vmax.f32 %v887, 0.0
        %v1105 = vmax.f32 %v889, 0.0
        %v1106 = vmax.f32 %v958, 0.0
        %v1107 = vmax.f32 %v960, 0.0
        %v1108 = vmax.f32 %v1029, 0.0
        %v1109 = vmax.f32 %v1031, 0.0
        %v1110 = vmax.f32 %v1100, 0.0
        %v1111 = vmax.f32 %v1102, 0.0
        %1112 = vst [vmem:[%s136] sm:$0xff] %v1104
        %1113 = vst [vmem:[%s136 + $0x8] sm:$0xff] %v1105
        %1114 = vst [vmem:[%s136 + $0x10] sm:$0xff] %v1106
        %1115 = vst [vmem:[%s136 + $0x18] sm:$0xff] %v1107
        %1116 = vst [vmem:[%s136 + $0x20] sm:$0xff] %v1108
        %1117 = vst [vmem:[%s136 + $0x28] sm:$0xff] %v1109
        %1118 = vst [vmem:[%s136 + $0x30] sm:$0xff] %v1110
        %1119 = vst [vmem:[%s136 + $0x38] sm:$0xff] %v1111
        %s1120 = sand.u32 %s81, 1
        %s1121 = scalar_lea.sflag [#allocation5], %s1120
        %s1122 = sand.u32 %s81, 1
        %s1123 = smul.addr %s1122, 64
        %s1124 = scalar_lea.vmem [#allocation4], %s1123
        // Predicated region
        $region45: #{tpu_custom_call.1} parent=27 // pred_check
          %p1125 = pneg %p91
        $region46: #{tpu_custom_call.1} parent=27 // pred_check_branch
          %1127 = sbr.rel (%p1125) target = $region48
        $region47: #{tpu_custom_call.1} parent=27 // pred_region
          %s1128 = smul.u32 8, %s22
          %s1130 = ssub.s32 1024, 1024
          %1131 = vsyncadd %s1121, %s1130
          %s1132 = smul.addr %s21, 16
          %s1133 = sadd.s32 %s1128, %s1132
          %s1134 = smul.addr %s1133, 128
          %s1135 = scalar_lea.hbm %s3, %s1134
          %s1137 = sshll.u32 %s1124, 4
          %s1138 = int_to_ptr.vmem [resolvable:$true] %s1137
          %1140 = dma.vmem_to_hbm [thread:$0]  %s1138, 1024, %s1135, %s1121
        $region48: #{tpu_custom_call.1} parent=27 // pred_fallthru
          _
      $region28: #{tpu_custom_call.1} parent=5 // pred_fallthru
        _
      %p1141 = scmp.le.s32.totalorder 2, %s12
      // Predicated region
      $region49: #{tpu_custom_call.1} parent=5 // pred_check
        %p1142 = pneg %p1141
      $region50: #{tpu_custom_call.1} parent=5 // pred_check_branch
        %1144 = sbr.rel (%p1142) target = $region52
      $region51: #{tpu_custom_call.1} parent=5 // pred_region
        %s1145 = ssub.s32 %s12, 2
        // Predicated region
        $region53: #{tpu_custom_call.1} parent=51 // pred_check
          %p1146 = pneg %p97
        $region54: #{tpu_custom_call.1} parent=51 // pred_check_branch
          %1148 = sbr.rel (%p1146) target = $region56
        $region55: #{tpu_custom_call.1} parent=51 // pred_region
          %s1149 = sand.u32 %s82, 1
          %s1150 = scalar_lea.sflag [#allocation5], %s1149
          %s1151 = sand.u32 %s82, 1
          %s1152 = smul.addr %s1151, 64
          %s1153 = scalar_lea.vmem [#allocation4], %s1152
          %1154 = dma.done %s1150, 1024
        $region56: #{tpu_custom_call.1} parent=51 // pred_fallthru
          _
      $region52: #{tpu_custom_call.1} parent=5 // pred_fallthru
        _
    $region6: #{tpu_custom_call.1} parent=1 // loop_footer
      %s16 = sadd.s32 1, %s12
    $region7: #{tpu_custom_call.1} parent=1 // loop_footer_branch
      %11 = sbr.rel target = $region3
    $region8: #{tpu_custom_call.1} parent=1 // loop_exit
      _
    %1155 = vsyncpa [#allocation5], 1
    %s1156 = scalar_lea.sflag [#allocation5], 1
    %1157 = vsyncpa %s1156, 1
  %1158 = vsyncmov [#allocation3]
  %s1159 = vpop.sfrf %1158
  %p1160 = scmp.eq.s32.totalorder %s1159, 0
  %p1161 = pneg %p1160
  %1163 = shalt.err (%p1161)
  %s1164 = scalar_lea.sflag [#allocation3], 1
  %1165 = vsyncmov %s1164
  %s1166 = vpop.sfrf %1165
  %p1167 = scmp.eq.s32.totalorder %s1166, 0
  %p1168 = pneg %p1167
  %1170 = shalt.err (%p1168)

</llo_original>
